<compile_context>
chip_gen: v7x
topology: tpu7x:2x2x1
jax: 0.10.0
libtpu: 0.0.40
codegen_flags: <defaults>
</compile_context>

<pallas_src>
import functools
import math

import jax
import jax.numpy as jnp
from jax.experimental import pallas as pl
from jax.experimental.pallas import tpu as pltpu

BN_EPS = 1e-5
ACT_DTYPE = jnp.bfloat16


# ----------------------------------------------------------------------------
# Pallas kernel: fused 1-D conv (stride already resolved to 1 by the wrapper)
#   + folded BatchNorm + optional residual add + optional ReLU
#   + optional fused 1x1 "downsample" conv+BN on the same input block.
# ----------------------------------------------------------------------------
def _conv_bn_kernel(*refs, taps, t_out, relu, has_res, has_ds, ds_off):
    it = iter(refs)
    x_ref = next(it)                       # (T_in, Cin_eff)      bf16
    w_ref = next(it)                       # (taps, Cin_eff, tn)  bf16
    s_ref = next(it)                       # (1, tn)              f32
    b_ref = next(it)                       # (1, tn)              f32
    res_ref = next(it) if has_res else None
    if has_ds:
        wds_ref = next(it)                 # (Cin_eff, tn)        bf16
        sds_ref = next(it)                 # (1, tn)              f32
        bds_ref = next(it)                 # (1, tn)              f32
    o_ref = next(it)                       # (t_out, tn)          bf16
    if has_ds:
        dso_ref = next(it)                 # (t_out, tn)          bf16

    tn = o_ref.shape[-1]
    acc = jnp.zeros((t_out, tn), jnp.float32)
    # Static unrolled loop over kernel taps; each tap is one MXU matmul with
    # a contiguous (stride-1) sublane slice of the input block.
    for k in range(taps):
        xs = x_ref[pl.ds(k, t_out), :]
        acc = acc + jnp.dot(xs, w_ref[k], preferred_element_type=jnp.float32)

    # Folded BatchNorm (eval mode): y = conv * scale + bias
    y = acc * s_ref[...] + b_ref[...]
    if has_res:
        y = y + res_ref[...].astype(jnp.float32)
    if relu:
        y = jnp.maximum(y, 0.0)
    o_ref[...] = y.astype(o_ref.dtype)

    if has_ds:
        # Fused 1x1 downsample conv + BN (no ReLU) on the same input block.
        xs = x_ref[pl.ds(ds_off, t_out), :]
        yd = jnp.dot(xs, wds_ref[...], preferred_element_type=jnp.float32)
        yd = yd * sds_ref[...] + bds_ref[...]
        dso_ref[...] = yd.astype(dso_ref.dtype)


# ----------------------------------------------------------------------------
# pallas_call wrapper (input already padded / deinterleaved, stride == 1)
# ----------------------------------------------------------------------------
def _pick_cout_tile(cout):
    # Lane-dense tiles; prefer 256-wide tiles (fewer grid steps, bigger
    # weight DMAs) at real widths, fall back to 128, else full (small) Cout.
    for tn in (256, 128):
        if cout % tn == 0:
            return tn
    return cout


def _fused_conv_call(x, w, scale, bias, *, t_out, relu, residual=None, ds=None):
    """x: (B, T_in, Cin_eff) bf16, w: (taps, Cin_eff, Cout) bf16.
    ds: optional (w_ds(Cin_eff, Cout) bf16, scale_ds, bias_ds, ds_off)."""
    B, T_in, Cin_eff = x.shape
    taps, _, Cout = w.shape

    tn = _pick_cout_tile(Cout)
    n_j = Cout // tn

    scale2 = scale.reshape(1, Cout).astype(jnp.float32)
    bias2 = bias.reshape(1, Cout).astype(jnp.float32)

    inputs = [x, w, scale2, bias2]
    in_specs = [
        # Constant along j (inner grid axis) -> no re-DMA per Cout tile.
        pl.BlockSpec((None, T_in, Cin_eff), lambda b, j: (b, 0, 0)),
        pl.BlockSpec((taps, Cin_eff, tn), lambda b, j: (0, 0, j)),
        pl.BlockSpec((1, tn), lambda b, j: (0, j)),
        pl.BlockSpec((1, tn), lambda b, j: (0, j)),
    ]

    has_res = residual is not None
    if has_res:
        inputs.append(residual.astype(ACT_DTYPE))
        in_specs.append(pl.BlockSpec((None, t_out, tn), lambda b, j: (b, 0, j)))

    has_ds = ds is not None
    ds_off = 0
    if has_ds:
        w_ds, s_ds, b_ds, ds_off = ds
        inputs += [w_ds,
                   s_ds.reshape(1, Cout).astype(jnp.float32),
                   b_ds.reshape(1, Cout).astype(jnp.float32)]
        in_specs += [
            pl.BlockSpec((Cin_eff, tn), lambda b, j: (0, j)),
            pl.BlockSpec((1, tn), lambda b, j: (0, j)),
            pl.BlockSpec((1, tn), lambda b, j: (0, j)),
        ]

    out_shapes = [jax.ShapeDtypeStruct((B, t_out, Cout), ACT_DTYPE)]
    out_specs = [pl.BlockSpec((None, t_out, tn), lambda b, j: (b, 0, j))]
    if has_ds:
        out_shapes.append(jax.ShapeDtypeStruct((B, t_out, Cout), ACT_DTYPE))
        out_specs.append(pl.BlockSpec((None, t_out, tn), lambda b, j: (b, 0, j)))

    kernel = functools.partial(
        _conv_bn_kernel, taps=taps, t_out=t_out, relu=relu,
        has_res=has_res, has_ds=has_ds, ds_off=ds_off)

    flops = 2 * B * t_out * taps * Cin_eff * Cout
    bytes_accessed = (x.size + w.size + B * t_out * Cout) * 2
    if has_ds:
        flops += 2 * B * t_out * Cin_eff * Cout
        bytes_accessed += (Cin_eff * Cout + B * t_out * Cout) * 2
    if has_res:
        bytes_accessed += B * t_out * Cout * 2

    outs = pl.pallas_call(
        kernel,
        out_shape=out_shapes,
        grid=(B, n_j),
        in_specs=in_specs,
        out_specs=out_specs,
        compiler_params=pltpu.CompilerParams(
            dimension_semantics=("parallel", "parallel"),
            vmem_limit_bytes=48 * 1024 * 1024),
        cost_estimate=pl.CostEstimate(
            flops=int(flops), transcendentals=0,
            bytes_accessed=int(bytes_accessed)),
    )(*inputs)
    if has_ds:
        return outs[0], outs[1]
    return outs[0]


# ----------------------------------------------------------------------------
# Per-conv wrappers: padding / stride-2 deinterleave done here in XLA.
# TODO(synk): halo handling could move in-kernel to avoid the jnp.pad copy.
# ----------------------------------------------------------------------------
def conv_block_s1(x, w, scale, bias, *, pad, relu, residual=None):
    """Stride-1 width-W conv + BN (+residual) (+ReLU).  x: (B,T,Cin) bf16."""
    W = w.shape[0]
    if pad > 0:
        x = jnp.pad(x, ((0, 0), (pad, pad), (0, 0)))
    t_out = x.shape[1] - W + 1
    return _fused_conv_call(x, w.astype(ACT_DTYPE), scale, bias,
                            t_out=t_out, relu=relu, residual=residual)


def conv_block_s2(x, w, scale, bias, *, pad, relu, ds=None):
    """Stride-2 conv expressed as a stride-1 conv over time-pair-deinterleaved
    input (2*Cin channels, ceil(W/2) taps).  Optionally fuses the block's 1x1
    stride-2 downsample conv (ds = (w_ds(Cin,Cout), scale_ds, bias_ds))."""
    B, T, Cin = x.shape
    W, _, Cout = w.shape
    xp = jnp.pad(x, ((0, 0), (pad, pad), (0, 0)))
    Tp = T + 2 * pad
    t_out = (Tp - W) // 2 + 1
    Wp = (W + 1) // 2                       # taps in pair space
    t_pairs = t_out - 1 + Wp                # pair rows needed
    need = 2 * t_pairs
    if need > Tp:
        xp = jnp.pad(xp, ((0, 0), (0, need - Tp), (0, 0)))
    elif need < Tp:
        xp = xp[:, :need]
    x2 = xp.reshape(B, t_pairs, 2 * Cin)    # row p = [xp[2p], xp[2p+1]]

    # Weight tap pair j holds [w[2j]; w[2j+1]] stacked along the channel axis.
    w_pad = jnp.pad(w, ((0, 2 * Wp - W), (0, 0), (0, 0)))
    w2 = w_pad.reshape(Wp, 2 * Cin, Cout).astype(ACT_DTYPE)

    ds_arg = None
    if ds is not None:
        w_ds, s_ds, b_ds = ds               # w_ds: (Cin, Cout)
        slot = pad % 2                      # parity of the padded tap offset
        wd2 = jnp.zeros((2, Cin, Cout), w_ds.dtype).at[slot].set(w_ds)
        wd2 = wd2.reshape(2 * Cin, Cout).astype(ACT_DTYPE)
        ds_arg = (wd2, s_ds, b_ds, pad // 2)

    return _fused_conv_call(x2, w2, scale, bias, t_out=t_out, relu=relu,
                            ds=ds_arg)


# ----------------------------------------------------------------------------
# Parameter init (matches PyTorch __init__ init scheme; eval-mode BN stats)
# ----------------------------------------------------------------------------
def _make_bn(c):
    return dict(gamma=jnp.ones((c,), jnp.float32),
                beta=jnp.zeros((c,), jnp.float32),
                mean=jnp.zeros((c,), jnp.float32),
                var=jnp.ones((c,), jnp.float32))


def _bn_fold(bn):
    scale = bn["gamma"] / jnp.sqrt(bn["var"] + BN_EPS)
    bias = bn["beta"] - bn["mean"] * scale
    return scale, bias


def init_params(key, feat_dim, layers, layer_widths, convsize):
    keys = list(jax.random.split(key, 256))
    kidx = [0]

    def next_key():
        k = keys[kidx[0]]
        kidx[0] += 1
        return k

    def conv_w(width, cin, cout, n):
        # PyTorch: weight ~ N(0, sqrt(2 / (kh * kw * out_channels)))
        std = math.sqrt(2.0 / n)
        return std * jax.random.normal(next_key(), (width, cin, cout), jnp.float32)

    params = {}
    c0 = layer_widths[0]
    # conv1: torch weight (c0, 1, feat_dim, 1) -> width-1 matmul over feat_dim
    params["conv1"] = conv_w(1, feat_dim, c0, feat_dim * 1 * c0)
    params["bn1"] = _make_bn(c0)
    # TODO(synk): self.batchnorm1 (BatchNorm2d(1)) is defined but never used in forward; omitted.

    inplanes = c0
    layer_params = []
    for nblocks, planes in zip(layers, layer_widths[1:]):
        blocks = []
        for bi in range(nblocks):
            s = 2 if bi == 0 else 1
            blk = {
                "conv1": conv_w(convsize, inplanes, planes, 1 * convsize * planes),
                "bn1": _make_bn(planes),
                "conv2": conv_w(convsize, planes, planes, 1 * convsize * planes),
                "bn2": _make_bn(planes),
                "stride": s,
            }
            if s != 1 or inplanes != planes:
                blk["ds_conv"] = conv_w(1, inplanes, planes, 1 * 1 * planes)
                blk["ds_bn"] = _make_bn(planes)
            blocks.append(blk)
            inplanes = planes
        layer_params.append(blocks)
    params["layers"] = layer_params
    params["convsize"] = convsize
    return params


# ----------------------------------------------------------------------------
# Forward pass (Pallas)
# ----------------------------------------------------------------------------
def resdavenet_forward(params, x):
    """x: (B, feat_dim, T) f32 -> (B, C_out, T_out) f32 (== torch x.squeeze(2))."""
    convsize = params["convsize"]
    pad = convsize // 2 if convsize % 2 == 0 else (convsize - 1) // 2

    h = jnp.transpose(x, (0, 2, 1)).astype(ACT_DTYPE)      # (B, T, feat_dim)

    s, b = _bn_fold(params["bn1"])
    # conv1: kernel (feat_dim, 1) == per-frame linear map feat_dim -> c0
    h = conv_block_s1(h, params["conv1"], s, b, pad=0, relu=True)

    for layer in params["layers"]:
        for blk in layer:
            s1, b1 = _bn_fold(blk["bn1"])
            if blk["stride"] == 2:
                ds = None
                if "ds_conv" in blk:
                    sd, bd = _bn_fold(blk["ds_bn"])
                    ds = (blk["ds_conv"][0], sd, bd)        # (Cin, Cout)
                outs = conv_block_s2(h, blk["conv1"], s1, b1, pad=pad,
                                     relu=True, ds=ds)
                if ds is not None:
                    out, residual = outs
                else:
                    out, residual = outs, h
            else:
                out = conv_block_s1(h, blk["conv1"], s1, b1, pad=pad, relu=True)
                if "ds_conv" in blk:
                    sd, bd = _bn_fold(blk["ds_bn"])
                    residual = conv_block_s1(h, blk["ds_conv"], sd, bd,
                                             pad=0, relu=False)
                else:
                    residual = h
            s2, b2 = _bn_fold(blk["bn2"])
            h = conv_block_s1(out, blk["conv2"], s2, b2, pad=pad,
                              relu=True, residual=residual)

    return jnp.transpose(h, (0, 2, 1)).astype(jnp.float32)


# ----------------------------------------------------------------------------
# Pure-JAX reference (same bf16 storage precision, direct strided conv; used
# only for the correctness self-check)
# ----------------------------------------------------------------------------
def _conv_ref(x, w, scale, bias, *, stride, pad, relu, residual=None):
    B, T, Cin = x.shape
    W, _, Cout = w.shape
    xp = jnp.pad(x.astype(jnp.float32), ((0, 0), (pad, pad), (0, 0)))
    t_out = (xp.shape[1] - W) // stride + 1
    wf = w.astype(ACT_DTYPE).astype(jnp.float32)
    out = jnp.zeros((B, t_out, Cout), jnp.float32)
    for k in range(W):
        xs = xp[:, k: k + (t_out - 1) * stride + 1: stride, :]
        out = out + jnp.einsum("btc,cd->btd", xs, wf[k])
    out = out * scale.reshape(1, 1, Cout) + bias.reshape(1, 1, Cout)
    if residual is not None:
        out = out + residual.astype(jnp.float32)
    if relu:
        out = jnp.maximum(out, 0.0)
    return out.astype(ACT_DTYPE)


def resdavenet_forward_ref(params, x):
    convsize = params["convsize"]
    pad = convsize // 2 if convsize % 2 == 0 else (convsize - 1) // 2
    h = jnp.transpose(x, (0, 2, 1)).astype(ACT_DTYPE)
    s, b = _bn_fold(params["bn1"])
    h = _conv_ref(h, params["conv1"], s, b, stride=1, pad=0, relu=True)
    for layer in params["layers"]:
        for blk in layer:
            s1, b1 = _bn_fold(blk["bn1"])
            out = _conv_ref(h, blk["conv1"], s1, b1, stride=blk["stride"],
                            pad=pad, relu=True)
            if "ds_conv" in blk:
                sd, bd = _bn_fold(blk["ds_bn"])
                residual = _conv_ref(h, blk["ds_conv"], sd, bd,
                                     stride=blk["stride"], pad=0, relu=False)
            else:
                residual = h
            s2, b2 = _bn_fold(blk["bn2"])
            h = _conv_ref(out, blk["conv2"], s2, b2, stride=1, pad=pad,
                          relu=True, residual=residual)
    return jnp.transpose(h, (0, 2, 1)).astype(jnp.float32)


# ----------------------------------------------------------------------------
# Demo / self-check
# ----------------------------------------------------------------------------
if __name__ == "__main__":
    # Small hyper-parameters consistent with the module's constructor args.
    B, FEAT, T = 2, 8, 32
    LAYERS = [2, 2, 2, 2]
    WIDTHS = [16, 16, 32, 32, 64]
    CONVSIZE = 9

    key = jax.random.PRNGKey(0)
    kx, kp = jax.random.split(key)
    x = jax.random.normal(kx, (B, FEAT, T), jnp.float32)

    params = init_params(kp, feat_dim=FEAT, layers=LAYERS,
                         layer_widths=WIDTHS, convsize=CONVSIZE)

    out = jax.block_until_ready(resdavenet_forward(params, x))

    # Expected: T halves 4 times (32 -> 2), final channels = WIDTHS[-1]
    assert out.shape == (B, WIDTHS[-1], T // 16), out.shape

    ref = jax.block_until_ready(resdavenet_forward_ref(params, x))
    err = float(jnp.max(jnp.abs(out - ref)))
    scale = float(jnp.max(jnp.abs(ref)))
    assert err <= 5e-2 * scale + 1e-2, (err, scale)

    print("KERNEL_OK")
</pallas_src>

<mosaic_0001>
module attributes {stable_mosaic.version = 11 : i64} {
  func.func @_conv_bn_kernel(%arg0: i32, %arg1: i32, %arg2: memref<1x32x8xbf16, #tpu.memory_space<vmem>>, %arg3: memref<1x8x16xbf16, #tpu.memory_space<vmem>>, %arg4: memref<1x16xf32, #tpu.memory_space<vmem>>, %arg5: memref<1x16xf32, #tpu.memory_space<vmem>>, %arg6: memref<1x32x16xbf16, #tpu.memory_space<vmem>>) attributes {dimension_semantics = [#tpu.dimension_semantics<parallel>, #tpu.dimension_semantics<parallel>], iteration_bounds = array<i64: 2, 1>, scalar_prefetch = 0 : i64, scratch_operands = 0 : i64, tpu.core_type = #tpu.core_type<tc>, window_params = [{transform_indices = @transform_0, window_bounds = array<i64: 1, 32, 8>}, {transform_indices = @transform_1, window_bounds = array<i64: 1, 8, 16>}, {transform_indices = @transform_2, window_bounds = array<i64: 1, 16>}, {transform_indices = @transform_3, window_bounds = array<i64: 1, 16>}, {transform_indices = @transform_4, window_bounds = array<i64: 1, 32, 16>}]} {
    %cst = arith.constant 0.000000e+00 : f32
    %0 = vector.broadcast %cst : f32 to vector<32x16xf32>
    %c0 = arith.constant 0 : index
    %c0_0 = arith.constant 0 : index
    %c0_1 = arith.constant 0 : index
    %1 = vector.load %arg2[%c0, %c0_0, %c0_1] : memref<1x32x8xbf16, #tpu.memory_space<vmem>>, vector<1x32x8xbf16>
    %2 = vector.shape_cast %1 : vector<1x32x8xbf16> to vector<32x8xbf16>
    %c0_2 = arith.constant 0 : index
    %c0_3 = arith.constant 0 : index
    %c0_4 = arith.constant 0 : index
    %3 = vector.load %arg3[%c0_2, %c0_3, %c0_4] : memref<1x8x16xbf16, #tpu.memory_space<vmem>>, vector<1x8x16xbf16>
    %4 = vector.shape_cast %3 : vector<1x8x16xbf16> to vector<8x16xbf16>
    %cst_5 = arith.constant dense<0.000000e+00> : vector<32x16xf32>
    %5 = tpu.matmul %2, %4, %cst_5 {dimension_numbers = #tpu.dot_dimension_numbers<[1], [0], [0], [1], [0, 0, 1, 1], [], []>} : vector<32x8xbf16>, vector<8x16xbf16>, vector<32x16xf32> -> vector<32x16xf32>
    %6 = arith.addf %0, %5 : vector<32x16xf32>
    %c0_6 = arith.constant 0 : index
    %c0_7 = arith.constant 0 : index
    %7 = vector.load %arg4[%c0_6, %c0_7] : memref<1x16xf32, #tpu.memory_space<vmem>>, vector<1x16xf32>
    %8 = vector.broadcast %7 : vector<1x16xf32> to vector<32x16xf32>
    %9 = arith.mulf %6, %8 : vector<32x16xf32>
    %c0_8 = arith.constant 0 : index
    %c0_9 = arith.constant 0 : index
    %10 = vector.load %arg5[%c0_8, %c0_9] : memref<1x16xf32, #tpu.memory_space<vmem>>, vector<1x16xf32>
    %11 = vector.broadcast %10 : vector<1x16xf32> to vector<32x16xf32>
    %12 = arith.addf %9, %11 : vector<32x16xf32>
    %cst_10 = arith.constant 0.000000e+00 : f32
    %13 = vector.broadcast %cst_10 : f32 to vector<32x16xf32>
    %14 = arith.maximumf %12, %13 : vector<32x16xf32>
    %15 = arith.truncf %14 : vector<32x16xf32> to vector<32x16xbf16>
    %c0_11 = arith.constant 0 : index
    %c0_12 = arith.constant 0 : index
    %c0_13 = arith.constant 0 : index
    %16 = vector.load %arg6[%c0_11, %c0_12, %c0_13] : memref<1x32x16xbf16, #tpu.memory_space<vmem>>, vector<1x32x16xbf16>
    %17 = vector.shape_cast %16 : vector<1x32x16xbf16> to vector<32x16xbf16>
    %18 = vector.shape_cast %15 : vector<32x16xbf16> to vector<1x32x16xbf16>
    tpu.vector_store %arg6[%c0_11, %c0_12, %c0_13], %18 {strides = array<i32>} : memref<1x32x16xbf16, #tpu.memory_space<vmem>>, vector<1x32x16xbf16>,
    return
  }
  func.func @transform_0(%arg0: i32, %arg1: i32) -> (i32, i32, i32) {
    %c0_i32 = arith.constant 0 : i32
    %c0_i32_0 = arith.constant 0 : i32
    %c0_i32_1 = arith.constant 0 : i32
    return %arg0, %c0_i32, %c0_i32_0 : i32, i32, i32
  }
  func.func @transform_1(%arg0: i32, %arg1: i32) -> (i32, i32, i32) {
    %c0_i32 = arith.constant 0 : i32
    %c0_i32_0 = arith.constant 0 : i32
    %c0_i32_1 = arith.constant 0 : i32
    return %c0_i32, %c0_i32_0, %arg1 : i32, i32, i32
  }
  func.func @transform_2(%arg0: i32, %arg1: i32) -> (i32, i32) {
    %c0_i32 = arith.constant 0 : i32
    %c0_i32_0 = arith.constant 0 : i32
    return %c0_i32, %arg1 : i32, i32
  }
  func.func @transform_3(%arg0: i32, %arg1: i32) -> (i32, i32) {
    %c0_i32 = arith.constant 0 : i32
    %c0_i32_0 = arith.constant 0 : i32
    return %c0_i32, %arg1 : i32, i32
  }
  func.func @transform_4(%arg0: i32, %arg1: i32) -> (i32, i32, i32) {
    %c0_i32 = arith.constant 0 : i32
    %c0_i32_0 = arith.constant 0 : i32
    return %arg0, %c0_i32, %arg1 : i32, i32, i32
  }
}

</mosaic_0001>

<llo_original>
// kernel: tpu_custom_call.1
$region0: #{tpu_custom_call.1}
  #allocation0 [shape = 'u32[]', space=smem, size = 0x4, offset = 0x4, fixed_abs, tag = 'smem constant byte address 0x4 - core index']
  #allocation1 [shape = 'u32[144,128]{1,0:T(1,128)}', space=vmem, size = 0x12000, scoped, tag = 'internal scratch']
  %s0 = inlined_call_operand.vmem [shape: bf16[2,32,8], index: 0, kind: input, shape index: {}]
  %s1 = inlined_call_operand.vmem [shape: bf16[1,8,16], index: 1, kind: input, shape index: {}]
  %s2 = inlined_call_operand.vmem [shape: f32[1,16], index: 2, kind: input, shape index: {}]
  %s3 = inlined_call_operand.vmem [shape: f32[1,16], index: 3, kind: input, shape index: {}]
  %s4 = inlined_call_operand.vmem [shape: bf16[2,32,16], index: 4, kind: output, shape index: {}]
  %s5 = sld [smem:[#allocation0]]
  $region49: #{tpu_custom_call.1} parent=0
    _
  %s7 = ssub.s32 1, %s5
  %s8 = scalar_select 0, %s7, %s5
  loop: start=0, step=1, limit=4
  $region2: #{tpu_custom_call.1} parent=0 // loop_pre_header
    _
  $region3: #{tpu_custom_call.1} parent=0 // loop_header
    %s10 = sphi 0, %s14
    %p11 = scmp.ge.s32.totalorder %s10, 4
    %s17 = sphi 0, %s29
    %s18 = sphi 0, %s25
    %s19 = sphi 0, %s17
    %s20 = sphi 0, %s18
    %s21 = sphi 0, %s19
    %s22 = sphi 0, %s20
    %s32 = sphi 0, %s34
    %s35 = sphi 0, %s32
    %s36 = sphi 0, %s35
    %s52 = sphi 0, %s36
    %s58 = sphi 0, %s60
    %s61 = sphi 0, %s58
    %s62 = sphi 0, %s61
    %s78 = sphi 0, %s62
    %s84 = sphi 0, %s86
    %s87 = sphi 0, %s84
    %s88 = sphi 0, %s87
    %s104 = sphi 0, %s88
    %s110 = sphi 0, %s112
    %s113 = sphi 0, %s110
    %s114 = sphi 0, %s113
    %s130 = sphi 0, %s114
    %s138 = sphi 0, %s140
    %s141 = sphi 0, %s138
    %s142 = sphi 0, %s141
    %s158 = sphi 0, %s142
  $region4: #{tpu_custom_call.1} parent=0 // loop_header_branch
    %13 = sbr.rel (%p11) target = $region8
  $region5: #{tpu_custom_call.1} parent=0 // loop_body
    %s15 = ssub.s32 %s10, 1
    %s16 = ssub.s32 %s10, 2
    %s23 = sadd.s32 1, %s18
    %p24 = scmp.ge.s32.totalorder %s23, 1
    %s25 = scalar_select %p24, 0, %s23
    %s26 = sadd.s32 1, %s17
    %s27 = scalar_select %p24, %s26, %s17
    %p28 = scmp.ge.s32.totalorder %s27, 2
    %s29 = scalar_select %p28, 0, %s27
    %s30 = ssub.s32 %s17, %s29
    %p31 = scmp.eq.s32.totalorder %s30, 0
    %s33 = sadd.s32 %s32, 1
    %s34 = scalar_select %p31, %s32, %s33
    %p37 = pneg %p31
    %p38 = scmp.eq.s32.totalorder %s10, 1
    %p39 = por %p37, %p38
    %p40 = scmp.ne.s32.totalorder %s32, %s35
    %p41 = scmp.eq.s32.totalorder %s10, 0
    %p42 = por %p40, %p41
    %p43 = scmp.ne.s32.totalorder %s32, %s35
    %p44 = scmp.eq.s32.totalorder %s15, 1
    %p45 = por %p43, %p44
    %p46 = scmp.ne.s32.totalorder %s35, %s36
    %p47 = scmp.eq.s32.totalorder %s15, 0
    %p48 = por %p46, %p47
    %p49 = scmp.ne.s32.totalorder %s35, %s36
    %p50 = scmp.eq.s32.totalorder %s16, 1
    %p51 = por %p49, %p50
    %p53 = scmp.ne.s32.totalorder %s36, %s52
    %p54 = scmp.eq.s32.totalorder %s16, 0
    %p55 = por %p53, %p54
    %s56 = ssub.s32 %s18, %s25
    %p57 = scmp.eq.s32.totalorder %s56, 0
    %s59 = sadd.s32 %s58, 1
    %s60 = scalar_select %p57, %s58, %s59
    %p63 = pneg %p57
    %p64 = scmp.eq.s32.totalorder %s10, 1
    %p65 = por %p63, %p64
    %p66 = scmp.ne.s32.totalorder %s58, %s61
    %p67 = scmp.eq.s32.totalorder %s10, 0
    %p68 = por %p66, %p67
    %p69 = scmp.ne.s32.totalorder %s58, %s61
    %p70 = scmp.eq.s32.totalorder %s15, 1
    %p71 = por %p69, %p70
    %p72 = scmp.ne.s32.totalorder %s61, %s62
    %p73 = scmp.eq.s32.totalorder %s15, 0
    %p74 = por %p72, %p73
    %p75 = scmp.ne.s32.totalorder %s61, %s62
    %p76 = scmp.eq.s32.totalorder %s16, 1
    %p77 = por %p75, %p76
    %p79 = scmp.ne.s32.totalorder %s62, %s78
    %p80 = scmp.eq.s32.totalorder %s16, 0
    %p81 = por %p79, %p80
    %s82 = ssub.s32 %s18, %s25
    %p83 = scmp.eq.s32.totalorder %s82, 0
    %s85 = sadd.s32 %s84, 1
    %s86 = scalar_select %p83, %s84, %s85
    %p89 = pneg %p83
    %p90 = scmp.eq.s32.totalorder %s10, 1
    %p91 = por %p89, %p90
    %p92 = scmp.ne.s32.totalorder %s84, %s87
    %p93 = scmp.eq.s32.totalorder %s10, 0
    %p94 = por %p92, %p93
    %p95 = scmp.ne.s32.totalorder %s84, %s87
    %p96 = scmp.eq.s32.totalorder %s15, 1
    %p97 = por %p95, %p96
    %p98 = scmp.ne.s32.totalorder %s87, %s88
    %p99 = scmp.eq.s32.totalorder %s15, 0
    %p100 = por %p98, %p99
    %p101 = scmp.ne.s32.totalorder %s87, %s88
    %p102 = scmp.eq.s32.totalorder %s16, 1
    %p103 = por %p101, %p102
    %p105 = scmp.ne.s32.totalorder %s88, %s104
    %p106 = scmp.eq.s32.totalorder %s16, 0
    %p107 = por %p105, %p106
    %s108 = ssub.s32 %s18, %s25
    %p109 = scmp.eq.s32.totalorder %s108, 0
    %s111 = sadd.s32 %s110, 1
    %s112 = scalar_select %p109, %s110, %s111
    %p115 = pneg %p109
    %p116 = scmp.eq.s32.totalorder %s10, 1
    %p117 = por %p115, %p116
    %p118 = scmp.ne.s32.totalorder %s110, %s113
    %p119 = scmp.eq.s32.totalorder %s10, 0
    %p120 = por %p118, %p119
    %p121 = scmp.ne.s32.totalorder %s110, %s113
    %p122 = scmp.eq.s32.totalorder %s15, 1
    %p123 = por %p121, %p122
    %p124 = scmp.ne.s32.totalorder %s113, %s114
    %p125 = scmp.eq.s32.totalorder %s15, 0
    %p126 = por %p124, %p125
    %p127 = scmp.ne.s32.totalorder %s113, %s114
    %p128 = scmp.eq.s32.totalorder %s16, 1
    %p129 = por %p127, %p128
    %p131 = scmp.ne.s32.totalorder %s114, %s130
    %p132 = scmp.eq.s32.totalorder %s16, 0
    %p133 = por %p131, %p132
    %s134 = ssub.s32 %s17, %s29
    %s135 = ssub.s32 %s18, %s25
    %s136 = sor.u32 %s134, %s135
    %p137 = scmp.eq.s32.totalorder %s136, 0
    %s139 = sadd.s32 %s138, 1
    %s140 = scalar_select %p137, %s138, %s139
    %p143 = pneg %p137
    %p144 = scmp.eq.s32.totalorder %s10, 1
    %p145 = por %p143, %p144
    %p146 = scmp.ne.s32.totalorder %s138, %s141
    %p147 = scmp.eq.s32.totalorder %s10, 0
    %p148 = por %p146, %p147
    %p149 = scmp.ne.s32.totalorder %s138, %s141
    %p150 = scmp.eq.s32.totalorder %s15, 1
    %p151 = por %p149, %p150
    %p152 = scmp.ne.s32.totalorder %s141, %s142
    %p153 = scmp.eq.s32.totalorder %s15, 0
    %p154 = por %p152, %p153
    %p155 = scmp.ne.s32.totalorder %s141, %s142
    %p156 = scmp.eq.s32.totalorder %s16, 1
    %p157 = por %p155, %p156
    %p159 = scmp.ne.s32.totalorder %s142, %s158
    %p160 = scmp.eq.s32.totalorder %s16, 0
    %p161 = por %p159, %p160
    %p162 = scmp.le.s32.totalorder 1, %s10
    %p163 = scmp.lt.s32.totalorder %s10, 3
    %p164 = pnand %p162, %p163
    %p165 = pneg %p164
    // Predicated region
    $region9: #{tpu_custom_call.1} parent=5 // pred_check
      _
    $region10: #{tpu_custom_call.1} parent=5 // pred_check_branch
      %167 = sbr.rel (%p164) target = $region12
    $region11: #{tpu_custom_call.1} parent=5 // pred_region
      %s168 = ssub.s32 %s10, 1
      // Predicated region
      $region13: #{tpu_custom_call.1} parent=11 // pred_check
        %p169 = pneg %p74
      $region14: #{tpu_custom_call.1} parent=11 // pred_check_branch
        %171 = sbr.rel (%p169) target = $region16
      $region15: #{tpu_custom_call.1} parent=11 // pred_region
        %p172 = scmp.lt.s32.totalorder %s20, 0
        %s173 = scalar_select %p172, %s20, 0
        %s174 = smul.addr %s173, 4
        %s175 = scalar_lea.vmem %s1, %s174
      $region16: #{tpu_custom_call.1} parent=11 // pred_fallthru
        _
      // Predicated region
      $region17: #{tpu_custom_call.1} parent=11 // pred_check
        %p176 = pneg %p100
      $region18: #{tpu_custom_call.1} parent=11 // pred_check_branch
        %178 = sbr.rel (%p176) target = $region20
      $region19: #{tpu_custom_call.1} parent=11 // pred_region
        %p179 = scmp.lt.s32.totalorder %s20, 0
        %s180 = scalar_select %p179, %s20, 0
        %s181 = scalar_lea.vmem %s2, %s180
      $region20: #{tpu_custom_call.1} parent=11 // pred_fallthru
        _
      // Predicated region
      $region21: #{tpu_custom_call.1} parent=11 // pred_check
        %p182 = pneg %p126
      $region22: #{tpu_custom_call.1} parent=11 // pred_check_branch
        %184 = sbr.rel (%p182) target = $region24
      $region23: #{tpu_custom_call.1} parent=11 // pred_region
        %p185 = scmp.lt.s32.totalorder %s20, 0
        %s186 = scalar_select %p185, %s20, 0
        %s187 = scalar_lea.vmem %s3, %s186
      $region24: #{tpu_custom_call.1} parent=11 // pred_fallthru
        _
    $region12: #{tpu_custom_call.1} parent=5 // pred_fallthru
      _
    %p188 = scmp.lt.s32.totalorder %s10, 2
    // Predicated region
    $region25: #{tpu_custom_call.1} parent=5 // pred_check
      %p189 = pneg %p188
    $region26: #{tpu_custom_call.1} parent=5 // pred_check_branch
      %191 = sbr.rel (%p189) target = $region28
    $region27: #{tpu_custom_call.1} parent=5 // pred_region
      // Predicated region
      $region29: #{tpu_custom_call.1} parent=27 // pred_check
        %p192 = pneg %p42
      $region30: #{tpu_custom_call.1} parent=27 // pred_check_branch
        %194 = sbr.rel (%p192) target = $region32
      $region31: #{tpu_custom_call.1} parent=27 // pred_region
        %p195 = scmp.lt.s32.totalorder %s17, 1
        %s196 = scalar_select %p195, %s17, 1
        %s197 = smul.addr %s196, 4
        %s198 = smul.addr %s197, 4
        %s199 = scalar_lea.vmem %s0, %s198
      $region32: #{tpu_custom_call.1} parent=27 // pred_fallthru
        _
    $region28: #{tpu_custom_call.1} parent=5 // pred_fallthru
      _
    %p200 = scmp.le.s32.totalorder 1, %s10
    %p201 = scmp.lt.s32.totalorder %s10, 3
    %p202 = pnand %p200, %p201
    %p203 = pneg %p202
    // Predicated region
    $region33: #{tpu_custom_call.1} parent=5 // pred_check
      _
    $region34: #{tpu_custom_call.1} parent=5 // pred_check_branch
      %205 = sbr.rel (%p202) target = $region36
    $region35: #{tpu_custom_call.1} parent=5 // pred_region
      %s206 = ssub.s32 %s10, 1
      %p207 = scmp.lt.s32.totalorder %s19, 1
      %s208 = scalar_select %p207, %s19, 1
      %s209 = smul.addr %s208, 4
      %s210 = smul.addr %s209, 4
      %s211 = scalar_lea.vmem %s0, %s210
      %p212 = pneg %p48
      %p213 = pneg %p45
      %p214 = scmp.lt.s32.totalorder %s20, 0
      %s215 = scalar_select %p214, %s20, 0
      %s216 = smul.addr %s215, 4
      %s217 = scalar_lea.vmem %s1, %s216
      %p218 = pneg %p74
      %p219 = pneg %p71
      %p220 = scmp.lt.s32.totalorder %s20, 0
      %s221 = scalar_select %p220, %s20, 0
      %s222 = scalar_lea.vmem %s2, %s221
      %p223 = pneg %p100
      %p224 = pneg %p97
      %p225 = scmp.lt.s32.totalorder %s20, 0
      %s226 = scalar_select %p225, %s20, 0
      %s227 = scalar_lea.vmem %s3, %s226
      %p228 = pneg %p126
      %p229 = pneg %p123
      %p230 = pneg %p154
      %p231 = pneg %p151
      %p232 = scmp.lt.s32.totalorder %s19, 1
      %s233 = scalar_select %p232, %s19, 1
      %p234 = scmp.lt.s32.totalorder %s20, 0
      %s235 = scalar_select %p234, %s20, 0
      %s236 = smul.addr %s233, 4
      %s237 = sadd.s32 %s235, %s236
      %s238 = smul.addr %s237, 4
      %s239 = scalar_lea.vmem %s4, %s238
      %p240 = scmp.lt.s32.totalorder %s19, 1
      %s241 = scalar_select %p240, %s19, 1
      %s242 = smul.addr %s241, 4
      %s243 = smul.addr %s242, 4
      %s244 = scalar_lea.vmem %s0, %s243
      %p245 = scmp.lt.s32.totalorder %s20, 0
      %s246 = scalar_select %p245, %s20, 0
      %s247 = smul.addr %s246, 4
      %s248 = scalar_lea.vmem %s1, %s247
      %p249 = scmp.lt.s32.totalorder %s20, 0
      %s250 = scalar_select %p249, %s20, 0
      %s251 = scalar_lea.vmem %s2, %s250
      %p252 = scmp.lt.s32.totalorder %s20, 0
      %s253 = scalar_select %p252, %s20, 0
      %s254 = scalar_lea.vmem %s3, %s253
      %p255 = scmp.lt.s32.totalorder %s19, 1
      %s256 = scalar_select %p255, %s19, 1
      %p257 = scmp.lt.s32.totalorder %s20, 0
      %s258 = scalar_select %p257, %s20, 0
      %s259 = smul.addr %s256, 4
      %s260 = sadd.s32 %s258, %s259
      %s261 = smul.addr %s260, 4
      %s262 = scalar_lea.vmem %s4, %s261
      %v264 = vld [vmem:[%s244] sm:$0xf]
      %v265 = vld [vmem:[%s244 + $0x4] sm:$0xf]
      %v266 = vld [vmem:[%s244 + $0x8] sm:$0xf]
      %v267 = vld [vmem:[%s244 + $0xc] sm:$0xf]
      %v268 = vld [vmem:[%s248] sm:$0xf]
      %v273 = vunpack.c.l.b16 %v264
      %v274 = vunpack.c.l.b16 %v265
      %v275 = vunpack.c.l.b16 %v266
      %v276 = vunpack.c.l.b16 %v267
      %v277 = vpack.c.b16 %v274, %v273
      %v278 = vpack.c.b16 %v276, %v275
      %vm279 = vcmask 64512
      %v281 = vsel %vm279, %v277, 0
      %v284 = vsel %vm279, %v278, 0
      %vm286 = vcmask 1043456
      %v288 = vsel %vm286, %v268, 0
      %290 = vmatprep.subr.bf16.mxu0 0
      %291 = vmatpush1.bf16.msra.mxu0 %v288
      %292 = vmatprep.subr.bf16.mxu0 0
      %293 = vmatpush1.bf16.msra.mxu0 0
      %294 = vmatprep.subr.bf16.mxu0 0
      %295 = vmatpush1.bf16.msra.mxu0 0
      %296 = vmatprep.subr.bf16.mxu0 0
      %297 = vmatpush1.bf16.msra.mxu0 0
      %298 = vmatprep.subr.bf16.mxu0 0
      %299 = vmatpush1.bf16.msra.mxu0 0
      %300 = vmatprep.subr.bf16.mxu0 0
      %301 = vmatpush1.bf16.msra.mxu0 0
      %302 = vmatprep.subr.bf16.mxu0 0
      %303 = vmatpush1.bf16.msra.mxu0 0
      %304 = vmatprep.subr.bf16.mxu0 0
      %305 = vmatpush1.bf16.msra.mxu0 0
      %306 = vmatprep.subr.bf16.mxu0 0
      %307 = vmatpush1.bf16.msra.mxu0 0
      %308 = vmatprep.subr.bf16.mxu0 0
      %309 = vmatpush1.bf16.msra.mxu0 0
      %310 = vmatprep.subr.bf16.mxu0 0
      %311 = vmatpush1.bf16.msra.mxu0 0
      %312 = vmatprep.subr.bf16.mxu0 0
      %313 = vmatpush1.bf16.msra.mxu0 0
      %314 = vmatprep.subr.bf16.mxu0 0
      %315 = vmatpush1.bf16.msra.mxu0 0
      %316 = vmatprep.subr.bf16.mxu0 0
      %317 = vmatpush1.bf16.msra.mxu0 0
      %318 = vmatprep.subr.bf16.mxu0 0
      %319 = vmatpush1.bf16.msra.mxu0 0
      %320 = vmatprep.subr.bf16.mxu0 0
      %321 = vmatpush1.bf16.msra.mxu0 0
      %322 = vmatprep.mubr.bf16.mxu0 0
      %323 = vmatmul.mubr.bf16.gmra.mrb[0].mxu0 %v281
      %v324 = vpop.f32.mrb[0].mxu0
      %v325 = vadd.f32 0.0, %v324
      %v326 = vpop.f32.mrb[0].mxu0
      %v327 = vpop.f32.mrb[0].mxu0
      %v328 = vadd.f32 0.0, %v327
      %v329 = vpop.f32.mrb[0].mxu0
      %330 = vmatprep.mubr.bf16.mxu0 0
      %331 = vmatmul.mubr.bf16.gmra.mrb[0].mxu0 %v284
      %v332 = vpop.f32.mrb[0].mxu0
      %v333 = vadd.f32 0.0, %v332
      %v334 = vpop.f32.mrb[0].mxu0
      %v335 = vpop.f32.mrb[0].mxu0
      %v336 = vadd.f32 0.0, %v335
      %v337 = vpop.f32.mrb[0].mxu0
      %338 = vdwg.mxu0
      %v339 = vld [vmem:[%s251] sm:$0x1]
      %v341 = vlaneseq
      %v342 = vshrl.u32 %v341, 7
      %v343 = vsub.s32 0, %v342
      %v344 = vrot.slane %v339, %v343
      %v346 = vmul.f32 %v325, %v344
      %v347 = vmul.f32 %v328, %v344
      %v348 = vmul.f32 %v333, %v344
      %v349 = vmul.f32 %v336, %v344
      %v350 = vld [vmem:[%s254] sm:$0x1]
      %v352 = vlaneseq
      %v353 = vshrl.u32 %v352, 7
      %v354 = vsub.s32 0, %v353
      %v355 = vrot.slane %v350, %v354
      %v357 = vadd.f32 %v346, %v355
      %v358 = vadd.f32 %v347, %v355
      %v359 = vadd.f32 %v348, %v355
      %v360 = vadd.f32 %v349, %v355
      %v361 = vmax.f32 %v357, 0.0
      %v362 = vmax.f32 %v358, 0.0
      %v363 = vmax.f32 %v359, 0.0
      %v364 = vmax.f32 %v360, 0.0
      %v365 = vpack.c.bf16 %v362, %v361
      %v366 = vpack.c.bf16 %v364, %v363
      %v369 = vunpack.c.l.b16 %v365
      %v370 = vunpack.c.h.b16 %v365
      %v371 = vunpack.c.l.b16 %v366
      %v372 = vunpack.c.h.b16 %v366
      %v373 = vpack.c.b16 %v369, %v369
      %v374 = vpack.c.b16 %v370, %v370
      %v375 = vpack.c.b16 %v371, %v371
      %v376 = vpack.c.b16 %v372, %v372
      %vm381 = vcmask 125952
      %382 = vst.msk [vmem:[%s262] sm:$0xf] %vm381, %v373
      %383 = vst.msk [vmem:[%s262 + $0x4] sm:$0xf] %vm381, %v374
      %384 = vst.msk [vmem:[%s262 + $0x8] sm:$0xf] %vm381, %v375
      %385 = vst.msk [vmem:[%s262 + $0xc] sm:$0xf] %vm381, %v376
      %p386 = scmp.lt.s32.totalorder %s19, 1
      %s387 = scalar_select %p386, %s19, 1
      %p388 = scmp.lt.s32.totalorder %s20, 0
      %s389 = scalar_select %p388, %s20, 0
      %s390 = smul.addr %s387, 4
      %s391 = sadd.s32 %s389, %s390
      %s392 = smul.addr %s391, 4
      %s393 = scalar_lea.vmem %s4, %s392
      // Predicated region
      $region37: #{tpu_custom_call.1} parent=35 // pred_check
        %p394 = pneg %p151
      $region38: #{tpu_custom_call.1} parent=35 // pred_check_branch
        %396 = sbr.rel (%p394) target = $region40
      $region39: #{tpu_custom_call.1} parent=35 // pred_region
        _
      $region40: #{tpu_custom_call.1} parent=35 // pred_fallthru
        _
    $region36: #{tpu_custom_call.1} parent=5 // pred_fallthru
      _
    %p397 = scmp.le.s32.totalorder 2, %s10
    // Predicated region
    $region41: #{tpu_custom_call.1} parent=5 // pred_check
      %p398 = pneg %p397
    $region42: #{tpu_custom_call.1} parent=5 // pred_check_branch
      %400 = sbr.rel (%p398) target = $region44
    $region43: #{tpu_custom_call.1} parent=5 // pred_region
      %s401 = ssub.s32 %s10, 2
      // Predicated region
      $region45: #{tpu_custom_call.1} parent=43 // pred_check
        %p402 = pneg %p157
      $region46: #{tpu_custom_call.1} parent=43 // pred_check_branch
        %404 = sbr.rel (%p402) target = $region48
      $region47: #{tpu_custom_call.1} parent=43 // pred_region
        %p405 = scmp.lt.s32.totalorder %s21, 1
        %s406 = scalar_select %p405, %s21, 1
        %p407 = scmp.lt.s32.totalorder %s22, 0
        %s408 = scalar_select %p407, %s22, 0
        %s409 = smul.addr %s406, 4
        %s410 = sadd.s32 %s408, %s409
        %s411 = smul.addr %s410, 4
        %s412 = scalar_lea.vmem %s4, %s411
      $region48: #{tpu_custom_call.1} parent=43 // pred_fallthru
        _
    $region44: #{tpu_custom_call.1} parent=5 // pred_fallthru
      _
  $region6: #{tpu_custom_call.1} parent=0 // loop_footer
    %s14 = sadd.s32 1, %s10
  $region7: #{tpu_custom_call.1} parent=0 // loop_footer_branch
    %9 = sbr.rel target = $region3
  $region8: #{tpu_custom_call.1} parent=0 // loop_exit
    _

</llo_original>
